<compile_context>
chip_gen: v6e
topology: v6e:2x2x1
jax: 0.10.0
libtpu: 0.0.40
codegen_flags: <defaults>
</compile_context>

<pallas_src>
import jax
import jax.numpy as jnp
from jax.experimental import pallas as pl
from jax.experimental.pallas import tpu as pltpu


def _sto_identity_kernel(x_ref, scale_ref, o_ref):
    # x_ref:     (tR, tHW) activation tile
    # scale_ref: (tR, 1)   per-row (= per (batch, channel)) noise scale;
    #            its dtype selects the compute precision (f32 upcast on v5e,
    #            native bf16 on v6e/v7x).
    o_ref[...] = (x_ref[...] * scale_ref[...]).astype(o_ref.dtype)


def _tpu_target():
    """Per-generation (target_block_bytes, vmem_limit_bytes, bf16_compute_ok)."""
    kind = ""
    try:
        kind = jax.devices()[0].device_kind.lower()
    except Exception:
        pass
    if ("v5 lite" in kind) or ("v5e" in kind) or ("v5lite" in kind):
        # v5e: ~820 GB/s HBM, 16 MiB scoped-VMEM default.  2 MiB blocks
        # (double-buffered in+out ~ 8 MiB).  No bf16 VALU -> f32 compute.
        return 2 << 20, 16 << 20, False
    if "v6" in kind:
        # v6e: 128 MiB physical / 32 MiB scoped default.  4 MiB blocks.
        return 4 << 20, 28 << 20, True
    if ("v7" in kind) or ("tpu7" in kind):
        # v7x: 64 MiB physical VMEM, ~3.2 TB/s HBM.  Bigger blocks amortize
        # the fixed ~0.35 us/step overhead; raise the scoped limit explicitly.
        return 6 << 20, 44 << 20, True
    # Unknown (v4 / v5p / interpret): conservative middle ground, f32 math.
    return 4 << 20, 28 << 20, False


def _choose_tiles(n_rows, hw, itemsize, target_block_bytes, max_rows=512):
    """Pick (tR, tHW): lane-dense, sublane-dense, ~target_block_bytes per block."""
    # Lane (last) dim: round down to a multiple of 128; pl.cdiv + boundary
    # masking handle the ragged tail.  Full extent only for hw < 128.
    if hw >= 128:
        t_hw = min((hw // 128) * 128, 4096)
    else:
        t_hw = hw
    # Sublane dim: multiple of 8, sized to the block budget, capped so the
    # lane-padded (tR, 1)->(tR, 128) scale buffer stays small.
    rows_budget = max(1, target_block_bytes // max(1, t_hw * itemsize))
    if n_rows >= 8:
        t_r = min((n_rows // 8) * 8, max(8, (rows_budget // 8) * 8), max_rows)
    else:
        t_r = n_rows  # full-extent sublane dim for tiny B*C
    # Megacore balance (v7x): avoid a degenerate (1, 1) grid when there are
    # enough rows to split across both TensorCores.
    if t_r >= n_rows and t_hw >= hw and n_rows >= 16:
        t_r = max(8, ((n_rows // 2) // 8) * 8)
    return t_r, t_hw


def sto_identity_forward(x, indices, posterior_U_mean, posterior_U_std, eps,
                         *, force_pallas=False, donate_x=False):
    """x: (B, C, H, W); indices: (B,) int32; params: (K, C, 1, 1); eps: (B, C, 1, 1)."""
    B, C, H, W = x.shape
    HW = H * W
    R = B * C

    target_block_bytes, vmem_limit_bytes, bf16_ok = _tpu_target()

    # Per-(batch, channel) scale, computed once in f32 outside the kernel.
    mean2 = posterior_U_mean.reshape(-1, C).astype(jnp.float32)      # (K, C)
    std2 = posterior_U_std.reshape(-1, C).astype(jnp.float32)        # (K, C)
    eps2 = eps.reshape(B, C).astype(jnp.float32)                     # (B, C)
    scale = mean2[indices] + jax.nn.softplus(std2[indices]) * eps2   # (B, C) f32

    # bf16 activations multiply natively in bf16 on v6e/v7x; otherwise the
    # f32 scale promotes the product to f32 inside the kernel.
    scale_dtype = x.dtype if (bf16_ok and x.dtype == jnp.bfloat16) else jnp.float32
    scale2 = scale.astype(scale_dtype).reshape(R, 1)

    # Flatten: rows = (batch, channel), lanes = spatial.
    x2 = x.reshape(R, HW)
    itemsize = x2.dtype.itemsize

    # Small-input escape hatch: for tiny tensors or HW < 128 the custom-call
    # launch + per-step overhead dwarfs the HBM traffic; XLA's fused
    # broadcast-mul is already at roofline.
    if not force_pallas and (HW < 128 or R * HW * itemsize < (2 << 20)):
        return (x2 * scale2).astype(x.dtype).reshape(B, C, H, W)

    tR, tHW = _choose_tiles(R, HW, itemsize, target_block_bytes)
    grid = (pl.cdiv(R, tR), pl.cdiv(HW, tHW))   # rows outer, spatial inner

    out2 = pl.pallas_call(
        _sto_identity_kernel,
        out_shape=jax.ShapeDtypeStruct((R, HW), x.dtype),
        grid=grid,
        in_specs=[
            pl.BlockSpec((tR, tHW), lambda r, s: (r, s)),   # x tile
            pl.BlockSpec((tR, 1), lambda r, s: (r, 0)),     # scale: constant over s
        ],
        out_specs=pl.BlockSpec((tR, tHW), lambda r, s: (r, s)),
        compiler_params=pltpu.CompilerParams(
            dimension_semantics=("parallel", "parallel"),
            vmem_limit_bytes=vmem_limit_bytes),
        cost_estimate=pl.CostEstimate(
            flops=R * HW,
            transcendentals=0,
            bytes_accessed=2 * R * HW * itemsize + R * scale2.dtype.itemsize),
        input_output_aliases=({0: 0} if donate_x else {}),
    )(x2, scale2)

    return out2.reshape(B, C, H, W)


def init_sto_identity_params(key, n_components, in_channels,
                             posterior_mean_init=(1.0, 0.5),
                             posterior_std_init=(0.05, 0.02)):
    """Deterministic re-implementation of StoLayer.sto_init parameter setup."""
    k_mean, k_std = jax.random.split(key)
    shape = (n_components, in_channels, 1, 1)
    mean = posterior_mean_init[0] + posterior_mean_init[1] * jax.random.normal(
        k_mean, shape, dtype=jnp.float32)
    std = posterior_std_init[0] + posterior_std_init[1] * jax.random.normal(
        k_std, shape, dtype=jnp.float32)
    # .abs_().expm1_().log_()  == inverse-softplus of |std|
    std = jnp.log(jnp.expm1(jnp.abs(std)))
    return mean, std


def reference_forward(x, indices, mean, std, eps):
    """Pure-JAX reference of the same math, for correctness checking."""
    scale = mean[indices] + jax.nn.softplus(std[indices]) * eps  # (B, C, 1, 1)
    return x * scale


if __name__ == "__main__":
    B, C, H, W = 2, 4, 16, 16
    K = 8  # n_components

    key = jax.random.PRNGKey(0)
    k_params, k_x, k_eps, k_idx = jax.random.split(key, 4)

    posterior_U_mean, posterior_U_std = init_sto_identity_params(k_params, K, C)

    x = jax.random.normal(k_x, (B, C, H, W), dtype=jnp.float32)
    indices = jax.random.randint(k_idx, (B,), 0, K, dtype=jnp.int32)
    # torch.randn-equivalent noise, sampled in plain JAX for determinism.
    # TODO(synk): in-kernel RNG (pltpu.prng_*) could replace host-side eps.
    eps = jax.random.normal(k_eps, (B, C, 1, 1), dtype=jnp.float32)

    # force_pallas=True: exercise the Pallas path even at this small test
    # shape (production callers fall back to fused XLA for tiny inputs).
    out = sto_identity_forward(x, indices, posterior_U_mean, posterior_U_std,
                               eps, force_pallas=True)
    out = jax.block_until_ready(out)

    ref = reference_forward(x, indices, posterior_U_mean, posterior_U_std, eps)
    assert out.shape == (B, C, H, W)
    assert jnp.allclose(out, ref, atol=1e-5, rtol=1e-5), "mismatch vs JAX reference"

    # Also verify the auto (escape-hatch) path gives the same result.
    out_auto = jax.block_until_ready(
        sto_identity_forward(x, indices, posterior_U_mean, posterior_U_std, eps))
    assert jnp.allclose(out_auto, ref, atol=1e-5, rtol=1e-5), "fallback mismatch"

    print("KERNEL_OK")
</pallas_src>

<mosaic_0001>
module attributes {stable_mosaic.version = 11 : i64} {
  func.func @_sto_identity_kernel(%arg0: i32, %arg1: i32, %arg2: memref<8x256xf32, #tpu.memory_space<vmem>>, %arg3: memref<8x1xf32, #tpu.memory_space<vmem>>, %arg4: memref<8x256xf32, #tpu.memory_space<vmem>>) attributes {dimension_semantics = [#tpu.dimension_semantics<parallel>, #tpu.dimension_semantics<parallel>], iteration_bounds = array<i64: 1, 1>, scalar_prefetch = 0 : i64, scratch_operands = 0 : i64, tpu.core_type = #tpu.core_type<tc>, window_params = [{transform_indices = @transform_0, window_bounds = array<i64: 8, 256>}, {transform_indices = @transform_1, window_bounds = array<i64: 8, 1>}, {transform_indices = @transform_2, window_bounds = array<i64: 8, 256>}]} {
    %c0 = arith.constant 0 : index
    %c0_0 = arith.constant 0 : index
    %0 = vector.load %arg2[%c0, %c0_0] : memref<8x256xf32, #tpu.memory_space<vmem>>, vector<8x256xf32>
    %c0_1 = arith.constant 0 : index
    %c0_2 = arith.constant 0 : index
    %1 = vector.load %arg3[%c0_1, %c0_2] : memref<8x1xf32, #tpu.memory_space<vmem>>, vector<8x1xf32>
    %2 = vector.broadcast %1 : vector<8x1xf32> to vector<8x256xf32>
    %3 = arith.mulf %0, %2 : vector<8x256xf32>
    %c0_3 = arith.constant 0 : index
    %c0_4 = arith.constant 0 : index
    %4 = vector.load %arg4[%c0_3, %c0_4] : memref<8x256xf32, #tpu.memory_space<vmem>>, vector<8x256xf32>
    tpu.vector_store %arg4[%c0_3, %c0_4], %3 {strides = array<i32>} : memref<8x256xf32, #tpu.memory_space<vmem>>, vector<8x256xf32>,
    return
  }
  func.func @transform_0(%arg0: i32, %arg1: i32) -> (i32, i32) {
    %c0_i32 = arith.constant 0 : i32
    return %arg0, %arg1 : i32, i32
  }
  func.func @transform_1(%arg0: i32, %arg1: i32) -> (i32, i32) {
    %c0_i32 = arith.constant 0 : i32
    %c0_i32_0 = arith.constant 0 : i32
    return %arg0, %c0_i32 : i32, i32
  }
  func.func @transform_2(%arg0: i32, %arg1: i32) -> (i32, i32) {
    %c0_i32 = arith.constant 0 : i32
    return %arg0, %arg1 : i32, i32
  }
}

</mosaic_0001>

<llo_original>
// kernel: tpu_custom_call.1
$region0: #{tpu_custom_call.1}
  #allocation0 [shape = 'u32[]', space=smem, size = 0x4, offset = 0x4, fixed_abs, tag = 'smem constant byte address 0x4 - core index']
  #allocation1 [shape = 'u32[144,128]{1,0:T(1,128)}', space=vmem, size = 0x12000, scoped, tag = 'internal scratch']
  %s0 = inlined_call_operand.hbm [shape: f32[8,256], index: 0, kind: input, shape index: {}]
  %s1 = inlined_call_operand.vmem [shape: f32[8,1], index: 1, kind: input, shape index: {}]
  %s2 = inlined_call_operand.hbm [shape: f32[8,256], index: 2, kind: output, shape index: {}]
  %s3 = sld [smem:[#allocation0]]
  $region22: #{tpu_custom_call.1} parent=0
    _
  %s5 = ssub.s32 1, %s3
  %s6 = scalar_select 0, %s5, %s3
  $region1: #{tpu_custom_call.1} parent=0
    #allocation2 [shape = 'u8[8192]{0}', space=vmem, size = 0x2000, scoped, tag = 'input window, operand 0, single buffered']
    #allocation3 [shape = 's32[1]{0}', space=sflag, size = 0x4, scoped, tag = 'scoped memory for tpu_custom_call.1']
    #allocation4 [shape = 's32[1]{0}', space=sflag, size = 0x4, scoped, tag = 'scoped memory for tpu_custom_call.1']
    #allocation5 [shape = 'u8[8192]{0}', space=vmem, size = 0x2000, scoped, tag = 'output window, operand 0, single buffered']
    %7 = vsyncpa [#allocation3], 0
    %8 = vsyncpa [#allocation4], 0
    // Predicated region
    $region2: #{tpu_custom_call.1} parent=1 // pred_check
      _
    $region3: #{tpu_custom_call.1} parent=1 // pred_check_branch
      %10 = sbr.rel (0) target = $region5
    $region4: #{tpu_custom_call.1} parent=1 // pred_region
      %s12 = ssub.s32 256, 256
      %13 = vsyncadd [#allocation3], %s12
      %s15 = sshll.u32 [#allocation2], 4
      %s16 = int_to_ptr.vmem [resolvable:$true] %s15
      %18 = dma.hbm_to_vmem [thread:$0]  %s0, 256, %s16, [#allocation3]
    $region5: #{tpu_custom_call.1} parent=1 // pred_fallthru
      _
    // Predicated region
    $region6: #{tpu_custom_call.1} parent=1 // pred_check
      _
    $region7: #{tpu_custom_call.1} parent=1 // pred_check_branch
      %20 = sbr.rel (0) target = $region9
    $region8: #{tpu_custom_call.1} parent=1 // pred_region
      _
    $region9: #{tpu_custom_call.1} parent=1 // pred_fallthru
      _
    // Predicated region
    $region10: #{tpu_custom_call.1} parent=1 // pred_check
      _
    $region11: #{tpu_custom_call.1} parent=1 // pred_check_branch
      %22 = sbr.rel (0) target = $region13
    $region12: #{tpu_custom_call.1} parent=1 // pred_region
      %23 = dma.done [#allocation3], 256
    $region13: #{tpu_custom_call.1} parent=1 // pred_fallthru
      _
    %v24 = vld [vmem:[#allocation2] sm:$0xff]
    %v25 = vld [vmem:[#allocation2 + $0x8] sm:$0xff]
    %v26 = vld [vmem:[%s1] sm:$0xff]
    %28 = vset.pattern.permute.xlu0 0
    %29 = vperm.xlu0 %28, %v26
    %v30 = vpop.permute.xlu0 %29
    %v32 = vmul.f32 %v24, %v30
    %v33 = vmul.f32 %v25, %v30
    %34 = vst [vmem:[#allocation5] sm:$0xff] %v32
    %35 = vst [vmem:[#allocation5 + $0x8] sm:$0xff] %v33
    // Predicated region
    $region14: #{tpu_custom_call.1} parent=1 // pred_check
      _
    $region15: #{tpu_custom_call.1} parent=1 // pred_check_branch
      %37 = sbr.rel (0) target = $region17
    $region16: #{tpu_custom_call.1} parent=1 // pred_region
      %s39 = ssub.s32 256, 256
      %40 = vsyncadd [#allocation4], %s39
      %s42 = sshll.u32 [#allocation5], 4
      %s43 = int_to_ptr.vmem [resolvable:$true] %s42
      %45 = dma.vmem_to_hbm [thread:$0]  %s43, 256, %s2, [#allocation4]
    $region17: #{tpu_custom_call.1} parent=1 // pred_fallthru
      _
    // Predicated region
    $region18: #{tpu_custom_call.1} parent=1 // pred_check
      _
    $region19: #{tpu_custom_call.1} parent=1 // pred_check_branch
      %47 = sbr.rel (0) target = $region21
    $region20: #{tpu_custom_call.1} parent=1 // pred_region
      %48 = dma.done [#allocation4], 256
    $region21: #{tpu_custom_call.1} parent=1 // pred_fallthru
      _
    %49 = vsyncpa [#allocation3], 1
    %50 = vsyncpa [#allocation4], 1

</llo_original>
